<compile_context>
chip_gen: v7x
topology: tpu7x:2x2x1
jax: 0.10.0
libtpu: 0.0.40
codegen_flags: <defaults>
</compile_context>

<pallas_src>
import functools

import jax
import jax.numpy as jnp
from jax.experimental import pallas as pl
from jax.experimental.pallas import tpu as pltpu


def _round_up(x, m):
    return ((x + m - 1) // m) * m


def _device_kind():
    try:
        return jax.devices()[0].device_kind.lower()
    except Exception:
        return ""


def _chip_config():
    """Per-generation tiling defaults + VMEM fallback (perf review)."""
    kind = _device_kind()
    if "v7" in kind:
        # v7x: 64 MiB VMEM/TC, ~3.2 TB/s HBM, 2 TCs per chip.
        return dict(tile_m=512, tile_h=256, row_align=256, num_cores=2,
                    vmem_fallback=64 << 20)
    if "v6" in kind:
        # v6e (Trillium): 128 MiB VMEM, ~640 flops/byte break-even.
        return dict(tile_m=1024, tile_h=512, row_align=256, num_cores=1,
                    vmem_fallback=128 << 20)
    if "v5 lite" in kind or "v5lite" in kind or "v5e" in kind:
        # v5e: ~240 flops/byte break-even; TM=256 already near compute-bound.
        return dict(tile_m=256, tile_h=512, row_align=128, num_cores=1,
                    vmem_fallback=128 << 20)
    # Unknown chip: conservative middle ground.
    return dict(tile_m=512, tile_h=512, row_align=128, num_cores=1,
                vmem_fallback=64 << 20)


def _vmem_capacity_bytes(cfg):
    try:
        cap = int(getattr(pltpu.get_tpu_info(), "vmem_capacity_bytes"))
        if cap > 0:
            return cap
    except Exception:
        pass
    return cfg["vmem_fallback"]


def _ffn_kernel(x_ref, w12_ref, w3_ref, o_ref, acc_ref):
    # x_ref:   (TM, E)      row tile of the flattened activations (resident over H)
    # w12_ref: (E, 2*TH)    packed [fc1 | fc2] weight tile (leading dim squeezed)
    # w3_ref:  (TH, E)      fc3 weight tile (transposed)
    # o_ref:   (TM, E)      output row tile (resident over the H axis)
    # acc_ref: (TM, E) f32  accumulator scratch
    h = pl.program_id(1)
    th = w3_ref.shape[0]

    x = x_ref[...]
    # Fused fc1+fc2: single MXU pass (TM, E) @ (E, 2*TH), f32 accumulation.
    h12 = jnp.dot(x, w12_ref[...], preferred_element_type=jnp.float32)
    h1 = h12[:, :th]
    h2 = h12[:, th:]
    # SwiGLU gate in f32 (VPU muls + EUP sigmoid).
    gated = (h1 * jax.nn.sigmoid(h1)) * h2
    # Partial fc3 product for this H tile.
    partial = jnp.dot(gated.astype(w3_ref.dtype), w3_ref[...],
                      preferred_element_type=jnp.float32)

    # First H tile: write directly instead of zero-init + "+=" (saves one full
    # (TM, E) f32 accumulator read+write pass per M tile).
    @pl.when(h == 0)
    def _():
        acc_ref[...] = partial

    @pl.when(h != 0)
    def _():
        acc_ref[...] += partial

    @pl.when(h == pl.num_programs(1) - 1)
    def _():
        o_ref[...] = acc_ref[...].astype(o_ref.dtype)


def pack_ffn_weights(w1, w2, w3, *, tile_h=None):
    """One-time weight prep (hoist out of the per-call hot path).

    w1, w2: [H, E] and w3: [E, H] in PyTorch nn.Linear layout.
    Returns (w12 [nH, E, 2*TH], w3t [H_pad, E]); H is zero-padded to a multiple
    of the hidden tile, which is exact for SwiGLU (silu(0)*0 == 0).
    """
    H, E = w1.shape
    if tile_h is None:
        tile_h = _chip_config()["tile_h"]
    th = min(tile_h, _round_up(H, 128))
    th = _round_up(th, 128)
    h_pad = _round_up(H, th)
    nh = h_pad // th

    def pad_cols(wt):  # [E, H] -> [E, H_pad]
        return jnp.pad(wt, ((0, 0), (0, h_pad - H)))

    w1t = pad_cols(w1.T).reshape(E, nh, th)
    w2t = pad_cols(w2.T).reshape(E, nh, th)
    w12 = jnp.concatenate([w1t, w2t], axis=-1)          # [E, nH, 2*TH]
    w12 = jnp.transpose(w12, (1, 0, 2))                 # [nH, E, 2*TH]
    w3t = jnp.pad(w3.T, ((0, h_pad - H), (0, 0)))       # [H_pad, E]
    return w12, w3t


@functools.partial(jax.jit, static_argnames=("tile_m",))
def feed_forward_packed(x, w12, w3t, *, tile_m=None):
    """x: [B, S, E]; w12: [nH, E, 2*TH]; w3t: [H_pad, E] (from pack_ffn_weights).

    For performance, keep x and the packed weights in bf16 (f32 accumulation is
    done inside the kernel); f32 operands take the slow multi-pass MXU route.
    """
    B, S, E = x.shape
    nh, _, th2 = w12.shape
    th = th2 // 2
    h_pad = nh * th

    cfg = _chip_config()
    if tile_m is None:
        tile_m = cfg["tile_m"]
    row_align = cfg["row_align"]

    M = B * S
    # Balanced row tile: all M tiles near-full (avoids ~2x padding waste when
    # M is just above a multiple of tile_m) and MXU-aligned when M is large.
    if M <= tile_m:
        tm = _round_up(M, 8)
    else:
        n_tiles = pl.cdiv(M, tile_m)
        tm = _round_up(pl.cdiv(M, n_tiles), row_align)

    # v7x megacore: make sure the "parallel" M axis has >= 2 tiles so both
    # TensorCores get work (no-op on single-core v5e/v6e).
    if cfg["num_cores"] >= 2 and pl.cdiv(M, tm) < 2 and M >= 2 * row_align:
        tm = _round_up(pl.cdiv(M, 2), row_align)

    itemsize = jnp.dtype(x.dtype).itemsize
    vmem_cap = _vmem_capacity_bytes(cfg)
    usable = (vmem_cap * 7) // 8   # headroom for compiler scratch / temps

    def vmem_est(tm_):
        # Double-buffered x/out/w12/w3 blocks + f32 accumulator + f32 gate temps.
        return (2 * (2 * tm_ * E + 3 * E * th) * itemsize
                + tm_ * E * 4
                + tm_ * 2 * th * 4 + tm_ * th * itemsize)

    # Shrink TM if the working set would not fit the chip's VMEM (e.g. v7x).
    while vmem_est(tm) > usable and tm > 128:
        tm = max(128, _round_up(tm // 2, 8))

    m_pad = _round_up(M, tm)
    x2d = x.reshape(M, E)
    if m_pad != M:
        x2d = jnp.pad(x2d, ((0, m_pad - M), (0, 0)))

    grid = (m_pad // tm, nh)  # M axis parallel (megacore), H axis = reduction

    vmem_limit = int(min(max(int(vmem_est(tm) * 1.25) + (4 << 20), 32 << 20),
                         usable))

    cost = pl.CostEstimate(
        flops=int(6 * m_pad * E * h_pad),
        transcendentals=int(m_pad * h_pad),
        bytes_accessed=int((2 * m_pad * E) * itemsize
                           + (w12.size + w3t.size) * itemsize * grid[0]),
    )

    out2d = pl.pallas_call(
        _ffn_kernel,
        out_shape=jax.ShapeDtypeStruct((m_pad, E), x.dtype),
        grid_spec=pltpu.PrefetchScalarGridSpec(
            num_scalar_prefetch=0,
            grid=grid,
            in_specs=[
                # x rows: resident across the H axis.
                pl.BlockSpec((tm, E), lambda m, h: (m, 0)),
                # Packed fc1|fc2 tile; leading size-1 dim squeezed away.
                # NOTE(v6e): if profiling shows exposed weight DMA between H
                # steps, add pipeline_mode=pl.Buffered(3) to these two weight
                # specs (skip on v7x, where VMEM is the constraint).
                pl.BlockSpec((pl.Squeezed(), E, 2 * th), lambda m, h: (h, 0, 0)),
                # fc3 tile (transposed).
                pl.BlockSpec((th, E), lambda m, h: (h, 0)),
            ],
            out_specs=pl.BlockSpec((tm, E), lambda m, h: (m, 0)),
            scratch_shapes=[pltpu.VMEM((tm, E), jnp.float32)],
        ),
        compiler_params=pltpu.CompilerParams(
            dimension_semantics=("parallel", "arbitrary"),
            vmem_limit_bytes=vmem_limit,
        ),
        cost_estimate=cost,
    )(x2d, w12, w3t)

    if m_pad != M:
        out2d = out2d[:M]
    return out2d.reshape(B, S, E)


def feed_forward(x, w1, w2, w3, *, tile_m=None, tile_h=None):
    """Convenience wrapper: packs weights then calls the kernel.
    For repeated calls, pack once with pack_ffn_weights and reuse."""
    w12, w3t = pack_ffn_weights(w1, w2, w3, tile_h=tile_h)
    return feed_forward_packed(x, w12, w3t, tile_m=tile_m)


def feed_forward_ref(x, w1, w2, w3):
    """Pure-JAX reference matching the PyTorch module exactly (f32 math)."""
    xf = x.astype(jnp.float32)
    h1 = jnp.einsum("bse,he->bsh", xf, w1.astype(jnp.float32))
    h2 = jnp.einsum("bse,he->bsh", xf, w2.astype(jnp.float32))
    gated = (h1 * jax.nn.sigmoid(h1)) * h2
    return jnp.einsum("bsh,eh->bse", gated, w3.astype(jnp.float32))


if __name__ == "__main__":
    # Small but lane-dense demo shapes: emb_dim=128, hidden_dim=256.
    B, S, E, Hd = 2, 8, 128, 256
    dtype = jnp.float32

    key = jax.random.PRNGKey(0)
    kx, k1, k2, k3 = jax.random.split(key, 4)
    x = jax.random.normal(kx, (B, S, E), dtype=dtype)
    # nn.Linear weight shapes: fc1/fc2 -> [hidden, emb], fc3 -> [emb, hidden]
    w1 = (jax.random.normal(k1, (Hd, E), dtype=dtype) * 0.02).astype(dtype)
    w2 = (jax.random.normal(k2, (Hd, E), dtype=dtype) * 0.02).astype(dtype)
    w3 = (jax.random.normal(k3, (E, Hd), dtype=dtype) * 0.02).astype(dtype)

    ref = feed_forward_ref(x, w1, w2, w3)

    # f32 correctness check (tile_h=128 so the H-reduction path is exercised).
    out = jax.block_until_ready(feed_forward(x, w1, w2, w3, tile_h=128))
    assert out.shape == (B, S, E)
    err = jnp.max(jnp.abs(out.astype(jnp.float32) - ref))
    assert err < 1e-5, f"f32 max abs err: {err}"

    # bf16 hot path (recommended on all generations): same kernel, looser tol.
    xb = x.astype(jnp.bfloat16)
    w12b, w3tb = pack_ffn_weights(w1.astype(jnp.bfloat16),
                                  w2.astype(jnp.bfloat16),
                                  w3.astype(jnp.bfloat16), tile_h=128)
    outb = jax.block_until_ready(feed_forward_packed(xb, w12b, w3tb))
    errb = jnp.max(jnp.abs(outb.astype(jnp.float32) - ref))
    assert errb < 5e-3, f"bf16 max abs err: {errb}"

    print("KERNEL_OK")
</pallas_src>

<mosaic_0001>
module attributes {stable_mosaic.version = 11 : i64} {
  func.func @_ffn_kernel(%arg0: i32, %arg1: i32, %arg2: memref<16x128xf32, #tpu.memory_space<vmem>>, %arg3: memref<1x128x256xf32, #tpu.memory_space<vmem>>, %arg4: memref<128x128xf32, #tpu.memory_space<vmem>>, %arg5: memref<16x128xf32, #tpu.memory_space<vmem>>, %arg6: memref<16x128xf32, #tpu.memory_space<vmem>>) attributes {dimension_semantics = [#tpu.dimension_semantics<parallel>, #tpu.dimension_semantics<arbitrary>], iteration_bounds = array<i64: 1, 2>, scalar_prefetch = 0 : i64, scratch_operands = 1 : i64, tpu.core_type = #tpu.core_type<tc>, window_params = [{transform_indices = @transform_0, window_bounds = array<i64: 16, 128>}, {transform_indices = @transform_1, window_bounds = array<i64: 1, 128, 256>}, {transform_indices = @transform_2, window_bounds = array<i64: 128, 128>}, {transform_indices = @transform_3, window_bounds = array<i64: 16, 128>}]} {
    %c0 = arith.constant 0 : index
    %c0_0 = arith.constant 0 : index
    %0 = vector.load %arg2[%c0, %c0_0] : memref<16x128xf32, #tpu.memory_space<vmem>>, vector<16x128xf32>
    %c0_1 = arith.constant 0 : index
    %c0_2 = arith.constant 0 : index
    %c0_3 = arith.constant 0 : index
    %1 = vector.load %arg3[%c0_1, %c0_2, %c0_3] : memref<1x128x256xf32, #tpu.memory_space<vmem>>, vector<1x128x256xf32>
    %2 = vector.shape_cast %1 : vector<1x128x256xf32> to vector<128x256xf32>
    %cst = arith.constant dense<0.000000e+00> : vector<16x256xf32>
    %3 = tpu.matmul %0, %2, %cst {dimension_numbers = #tpu.dot_dimension_numbers<[1], [0], [0], [1], [0, 0, 1, 1], [], []>} : vector<16x128xf32>, vector<128x256xf32>, vector<16x256xf32> -> vector<16x256xf32>
    %4 = vector.extract_strided_slice %3 {offsets = [0, 0], sizes = [16, 128], strides = [1, 1]} : vector<16x256xf32> to vector<16x128xf32>
    %5 = vector.extract_strided_slice %3 {offsets = [0, 128], sizes = [16, 128], strides = [1, 1]} : vector<16x256xf32> to vector<16x128xf32>
    %6 = arith.negf %4 : vector<16x128xf32>
    %7 = math.exp %6 : vector<16x128xf32>
    %cst_4 = arith.constant 1.000000e+00 : f32
    %8 = vector.broadcast %cst_4 : f32 to vector<16x128xf32>
    %9 = arith.addf %8, %7 : vector<16x128xf32>
    %10 = arith.divf %8, %9 : vector<16x128xf32>
    %11 = arith.mulf %4, %10 : vector<16x128xf32>
    %12 = arith.mulf %11, %5 : vector<16x128xf32>
    %c0_5 = arith.constant 0 : index
    %c0_6 = arith.constant 0 : index
    %13 = vector.load %arg4[%c0_5, %c0_6] : memref<128x128xf32, #tpu.memory_space<vmem>>, vector<128x128xf32>
    %cst_7 = arith.constant dense<0.000000e+00> : vector<16x128xf32>
    %14 = tpu.matmul %12, %13, %cst_7 {dimension_numbers = #tpu.dot_dimension_numbers<[1], [0], [0], [1], [0, 0, 1, 1], [], []>} : vector<16x128xf32>, vector<128x128xf32>, vector<16x128xf32> -> vector<16x128xf32>
    %c0_i32 = arith.constant 0 : i32
    %15 = arith.cmpi eq, %arg1, %c0_i32 : i32
    %16 = arith.extui %15 : i1 to i32
    %c0_i32_8 = arith.constant 0 : i32
    %17 = arith.cmpi ne, %16, %c0_i32_8 : i32
    scf.if %17 {
      %c0_12 = arith.constant 0 : index
      %c0_13 = arith.constant 0 : index
      %24 = vector.load %arg6[%c0_12, %c0_13] : memref<16x128xf32, #tpu.memory_space<vmem>>, vector<16x128xf32>
      tpu.vector_store %arg6[%c0_12, %c0_13], %14 {strides = array<i32>} : memref<16x128xf32, #tpu.memory_space<vmem>>, vector<16x128xf32>,
    } else {
    }
    %c0_i32_9 = arith.constant 0 : i32
    %18 = arith.cmpi ne, %arg1, %c0_i32_9 : i32
    %19 = arith.extui %18 : i1 to i32
    %c0_i32_10 = arith.constant 0 : i32
    %20 = arith.cmpi ne, %19, %c0_i32_10 : i32
    scf.if %20 {
      %c0_12 = arith.constant 0 : index
      %c0_13 = arith.constant 0 : index
      %24 = vector.load %arg6[%c0_12, %c0_13] : memref<16x128xf32, #tpu.memory_space<vmem>>, vector<16x128xf32>
      %25 = arith.addf %24, %14 : vector<16x128xf32>
      %c0_14 = arith.constant 0 : index
      %c0_15 = arith.constant 0 : index
      %26 = vector.load %arg6[%c0_14, %c0_15] : memref<16x128xf32, #tpu.memory_space<vmem>>, vector<16x128xf32>
      tpu.vector_store %arg6[%c0_14, %c0_15], %25 {strides = array<i32>} : memref<16x128xf32, #tpu.memory_space<vmem>>, vector<16x128xf32>,
    } else {
    }
    %c1_i32 = arith.constant 1 : i32
    %21 = arith.cmpi eq, %arg1, %c1_i32 : i32
    %22 = arith.extui %21 : i1 to i32
    %c0_i32_11 = arith.constant 0 : i32
    %23 = arith.cmpi ne, %22, %c0_i32_11 : i32
    scf.if %23 {
      %c0_12 = arith.constant 0 : index
      %c0_13 = arith.constant 0 : index
      %24 = vector.load %arg6[%c0_12, %c0_13] : memref<16x128xf32, #tpu.memory_space<vmem>>, vector<16x128xf32>
      %c0_14 = arith.constant 0 : index
      %c0_15 = arith.constant 0 : index
      %25 = vector.load %arg5[%c0_14, %c0_15] : memref<16x128xf32, #tpu.memory_space<vmem>>, vector<16x128xf32>
      tpu.vector_store %arg5[%c0_14, %c0_15], %24 {strides = array<i32>} : memref<16x128xf32, #tpu.memory_space<vmem>>, vector<16x128xf32>,
    } else {
    }
    return
  }
  func.func @transform_0(%arg0: i32, %arg1: i32) -> (i32, i32) {
    %c0_i32 = arith.constant 0 : i32
    %c0_i32_0 = arith.constant 0 : i32
    return %arg0, %c0_i32 : i32, i32
  }
  func.func @transform_1(%arg0: i32, %arg1: i32) -> (i32, i32, i32) {
    %c0_i32 = arith.constant 0 : i32
    %c0_i32_0 = arith.constant 0 : i32
    %c0_i32_1 = arith.constant 0 : i32
    return %arg1, %c0_i32, %c0_i32_0 : i32, i32, i32
  }
  func.func @transform_2(%arg0: i32, %arg1: i32) -> (i32, i32) {
    %c0_i32 = arith.constant 0 : i32
    %c0_i32_0 = arith.constant 0 : i32
    return %arg1, %c0_i32 : i32, i32
  }
  func.func @transform_3(%arg0: i32, %arg1: i32) -> (i32, i32) {
    %c0_i32 = arith.constant 0 : i32
    %c0_i32_0 = arith.constant 0 : i32
    return %arg0, %c0_i32 : i32, i32
  }
}

</mosaic_0001>

<llo_original>
// kernel: feed_forward_packed.1
$region0: #{feed_forward_packed.1}
  #allocation0 [shape = 'u32[]', space=smem, size = 0x4, offset = 0x4, fixed_abs, tag = 'smem constant byte address 0x4 - core index']
  #allocation1 [shape = 'u32[144,128]{1,0:T(1,128)}', space=vmem, size = 0x12000, scoped, tag = 'internal scratch']
  #allocation2 [shape = 'f32[16,128]{1,0:T(8,128)}', space=vmem, size = 0x2000, scoped, tag = 'scratch operand']
  %s0 = inlined_call_operand.hbm [shape: f32[16,128], index: 0, kind: input, shape index: {}]
  %s1 = inlined_call_operand.hbm [shape: f32[2,128,256], index: 1, kind: input, shape index: {}]
  %s2 = inlined_call_operand.hbm [shape: f32[256,128], index: 2, kind: input, shape index: {}]
  %s3 = inlined_call_operand.hbm [shape: f32[16,128], index: 3, kind: output, shape index: {}]
  %s4 = sld [smem:[#allocation0]]
  $region69: #{feed_forward_packed.1} parent=0
    _
  %s6 = ssub.s32 1, %s4
  %s7 = scalar_select 0, %s6, %s4
  $region1: #{feed_forward_packed.1} parent=0
    #allocation3 [shape = 'u8[8192]{0}', space=vmem, size = 0x2000, scoped, tag = 'input window, operand 0, single buffered']
    #allocation4 [shape = 's32[2]{0}', space=sflag, size = 0x8, scoped, tag = 'scoped memory for feed_forward_packed.1']
    #allocation5 [shape = 's32[2]{0}', space=sflag, size = 0x8, scoped, tag = 'scoped memory for feed_forward_packed.1']
    #allocation6 [shape = 'u8[262144]{0}', space=vmem, size = 0x40000, scoped, tag = 'input window, operand 1']
    #allocation7 [shape = 's32[2]{0}', space=sflag, size = 0x8, scoped, tag = 'scoped memory for feed_forward_packed.1']
    #allocation8 [shape = 'u8[131072]{0}', space=vmem, size = 0x20000, scoped, tag = 'input window, operand 2']
    #allocation9 [shape = 'u8[8192]{0}', space=vmem, size = 0x2000, scoped, tag = 'output window, operand 0, single buffered']
    %8 = vsyncpa [#allocation4], 0
    %9 = vsyncpa [#allocation7], 0
    %s10 = scalar_lea.sflag [#allocation7], 1
    %11 = vsyncpa %s10, 0
    %12 = vsyncpa [#allocation5], 0
    loop: start=0, step=1, limit=4
    $region2: #{feed_forward_packed.1} parent=1 // loop_pre_header
      _
    $region3: #{feed_forward_packed.1} parent=1 // loop_header
      %s14 = sphi 0, %s18
      %p15 = scmp.ge.s32.totalorder %s14, 4
      %s21 = sphi 0, %s33
      %s22 = sphi 0, %s29
      %s23 = sphi 0, %s21
      %s24 = sphi 0, %s22
      %s25 = sphi 0, %s23
      %s26 = sphi 0, %s24
      %s36 = sphi 0, %s38
      %s39 = sphi 0, %s36
      %s40 = sphi 0, %s39
      %s56 = sphi 0, %s40
      %s62 = sphi 0, %s64
      %s65 = sphi 0, %s62
      %s66 = sphi 0, %s65
      %s82 = sphi 0, %s66
      %s88 = sphi 0, %s90
      %s91 = sphi 0, %s88
      %s92 = sphi 0, %s91
      %s108 = sphi 0, %s92
      %s114 = sphi 0, %s116
      %s117 = sphi 0, %s114
      %s118 = sphi 0, %s117
      %s134 = sphi 0, %s118
    $region4: #{feed_forward_packed.1} parent=1 // loop_header_branch
      %17 = sbr.rel (%p15) target = $region8
    $region5: #{feed_forward_packed.1} parent=1 // loop_body
      %s19 = ssub.s32 %s14, 1
      %s20 = ssub.s32 %s14, 2
      %s27 = sadd.s32 1, %s22
      %p28 = scmp.ge.s32.totalorder %s27, 2
      %s29 = scalar_select %p28, 0, %s27
      %s30 = sadd.s32 1, %s21
      %s31 = scalar_select %p28, %s30, %s21
      %p32 = scmp.ge.s32.totalorder %s31, 1
      %s33 = scalar_select %p32, 0, %s31
      %s34 = ssub.s32 %s21, %s33
      %p35 = scmp.eq.s32.totalorder %s34, 0
      %s37 = sadd.s32 %s36, 1
      %s38 = scalar_select %p35, %s36, %s37
      %p41 = pneg %p35
      %p42 = scmp.eq.s32.totalorder %s14, 1
      %p43 = por %p41, %p42
      %p44 = scmp.ne.s32.totalorder %s36, %s39
      %p45 = scmp.eq.s32.totalorder %s14, 0
      %p46 = por %p44, %p45
      %p47 = scmp.ne.s32.totalorder %s36, %s39
      %p48 = scmp.eq.s32.totalorder %s19, 1
      %p49 = por %p47, %p48
      %p50 = scmp.ne.s32.totalorder %s39, %s40
      %p51 = scmp.eq.s32.totalorder %s19, 0
      %p52 = por %p50, %p51
      %p53 = scmp.ne.s32.totalorder %s39, %s40
      %p54 = scmp.eq.s32.totalorder %s20, 1
      %p55 = por %p53, %p54
      %p57 = scmp.ne.s32.totalorder %s40, %s56
      %p58 = scmp.eq.s32.totalorder %s20, 0
      %p59 = por %p57, %p58
      %s60 = ssub.s32 %s22, %s29
      %p61 = scmp.eq.s32.totalorder %s60, 0
      %s63 = sadd.s32 %s62, 1
      %s64 = scalar_select %p61, %s62, %s63
      %p67 = pneg %p61
      %p68 = scmp.eq.s32.totalorder %s14, 1
      %p69 = por %p67, %p68
      %p70 = scmp.ne.s32.totalorder %s62, %s65
      %p71 = scmp.eq.s32.totalorder %s14, 0
      %p72 = por %p70, %p71
      %p73 = scmp.ne.s32.totalorder %s62, %s65
      %p74 = scmp.eq.s32.totalorder %s19, 1
      %p75 = por %p73, %p74
      %p76 = scmp.ne.s32.totalorder %s65, %s66
      %p77 = scmp.eq.s32.totalorder %s19, 0
      %p78 = por %p76, %p77
      %p79 = scmp.ne.s32.totalorder %s65, %s66
      %p80 = scmp.eq.s32.totalorder %s20, 1
      %p81 = por %p79, %p80
      %p83 = scmp.ne.s32.totalorder %s66, %s82
      %p84 = scmp.eq.s32.totalorder %s20, 0
      %p85 = por %p83, %p84
      %s86 = ssub.s32 %s22, %s29
      %p87 = scmp.eq.s32.totalorder %s86, 0
      %s89 = sadd.s32 %s88, 1
      %s90 = scalar_select %p87, %s88, %s89
      %p93 = pneg %p87
      %p94 = scmp.eq.s32.totalorder %s14, 1
      %p95 = por %p93, %p94
      %p96 = scmp.ne.s32.totalorder %s88, %s91
      %p97 = scmp.eq.s32.totalorder %s14, 0
      %p98 = por %p96, %p97
      %p99 = scmp.ne.s32.totalorder %s88, %s91
      %p100 = scmp.eq.s32.totalorder %s19, 1
      %p101 = por %p99, %p100
      %p102 = scmp.ne.s32.totalorder %s91, %s92
      %p103 = scmp.eq.s32.totalorder %s19, 0
      %p104 = por %p102, %p103
      %p105 = scmp.ne.s32.totalorder %s91, %s92
      %p106 = scmp.eq.s32.totalorder %s20, 1
      %p107 = por %p105, %p106
      %p109 = scmp.ne.s32.totalorder %s92, %s108
      %p110 = scmp.eq.s32.totalorder %s20, 0
      %p111 = por %p109, %p110
      %s112 = ssub.s32 %s21, %s33
      %p113 = scmp.eq.s32.totalorder %s112, 0
      %s115 = sadd.s32 %s114, 1
      %s116 = scalar_select %p113, %s114, %s115
      %p119 = pneg %p113
      %p120 = scmp.eq.s32.totalorder %s14, 1
      %p121 = por %p119, %p120
      %p122 = scmp.ne.s32.totalorder %s114, %s117
      %p123 = scmp.eq.s32.totalorder %s14, 0
      %p124 = por %p122, %p123
      %p125 = scmp.ne.s32.totalorder %s114, %s117
      %p126 = scmp.eq.s32.totalorder %s19, 1
      %p127 = por %p125, %p126
      %p128 = scmp.ne.s32.totalorder %s117, %s118
      %p129 = scmp.eq.s32.totalorder %s19, 0
      %p130 = por %p128, %p129
      %p131 = scmp.ne.s32.totalorder %s117, %s118
      %p132 = scmp.eq.s32.totalorder %s20, 1
      %p133 = por %p131, %p132
      %p135 = scmp.ne.s32.totalorder %s118, %s134
      %p136 = scmp.eq.s32.totalorder %s20, 0
      %p137 = por %p135, %p136
      %p138 = scmp.le.s32.totalorder 1, %s14
      %p139 = scmp.lt.s32.totalorder %s14, 3
      %p140 = pnand %p138, %p139
      %p141 = pneg %p140
      // Predicated region
      $region9: #{feed_forward_packed.1} parent=5 // pred_check
        _
      $region10: #{feed_forward_packed.1} parent=5 // pred_check_branch
        %143 = sbr.rel (%p140) target = $region12
      $region11: #{feed_forward_packed.1} parent=5 // pred_region
        %s144 = ssub.s32 %s14, 1
        // Predicated region
        $region13: #{feed_forward_packed.1} parent=11 // pred_check
          %p145 = pneg %p52
        $region14: #{feed_forward_packed.1} parent=11 // pred_check_branch
          %147 = sbr.rel (%p145) target = $region16
        $region15: #{feed_forward_packed.1} parent=11 // pred_region
          %s148 = smul.u32 2, %s23
          %s150 = ssub.s32 256, 256
          %151 = vsyncadd [#allocation4], %s150
          %s152 = smul.addr %s148, 128
          %s153 = scalar_lea.hbm %s0, %s152
          %s154 = sshll.u32 [#allocation3], 4
          %s155 = int_to_ptr.vmem [resolvable:$true] %s154
          %160 = dma.hbm_to_vmem [thread:$0]  %s153, 256, %s155, [#allocation4], 128, 128, 8
        $region16: #{feed_forward_packed.1} parent=11 // pred_fallthru
          _
      $region12: #{feed_forward_packed.1} parent=5 // pred_fallthru
        _
      %p161 = scmp.lt.s32.totalorder %s14, 2
      // Predicated region
      $region17: #{feed_forward_packed.1} parent=5 // pred_check
        %p162 = pneg %p161
      $region18: #{feed_forward_packed.1} parent=5 // pred_check_branch
        %164 = sbr.rel (%p162) target = $region20
      $region19: #{feed_forward_packed.1} parent=5 // pred_region
        // Predicated region
        $region21: #{feed_forward_packed.1} parent=19 // pred_check
          %p165 = pneg %p72
        $region22: #{feed_forward_packed.1} parent=19 // pred_check_branch
          %167 = sbr.rel (%p165) target = $region24
        $region23: #{feed_forward_packed.1} parent=19 // pred_region
          %s168 = sand.u32 %s14, 1
          %s169 = scalar_lea.sflag [#allocation7], %s168
          %s170 = sand.u32 %s62, 1
          %s171 = smul.addr %s170, 256
          %s172 = scalar_lea.vmem [#allocation6], %s171
          %s174 = ssub.s32 4096, 4096
          %175 = vsyncadd %s169, %s174
          %s176 = smul.addr %s22, 32
          %s177 = smul.addr %s176, 128
          %s178 = scalar_lea.hbm %s1, %s177
          %s179 = sshll.u32 %s172, 4
          %s180 = int_to_ptr.vmem [resolvable:$true] %s179
          %185 = dma.hbm_to_vmem [thread:$0]  %s178, 4096, %s180, %s169, 256, 256, 16
        $region24: #{feed_forward_packed.1} parent=19 // pred_fallthru
          _
        // Predicated region
        $region25: #{feed_forward_packed.1} parent=19 // pred_check
          %p186 = pneg %p98
        $region26: #{feed_forward_packed.1} parent=19 // pred_check_branch
          %188 = sbr.rel (%p186) target = $region28
        $region27: #{feed_forward_packed.1} parent=19 // pred_region
          %s189 = sand.u32 %s14, 1
          %s190 = scalar_lea.sflag [#allocation7], %s189
          %s191 = sand.u32 %s88, 1
          %s192 = smul.addr %s191, 128
          %s193 = scalar_lea.vmem [#allocation8], %s192
          %s194 = smul.u32 16, %s22
          %s196 = ssub.s32 2048, 2048
          %197 = vsyncadd %s190, %s196
          %s198 = smul.addr %s194, 128
          %s199 = scalar_lea.hbm %s2, %s198
          %s200 = sshll.u32 %s193, 4
          %s201 = int_to_ptr.vmem [resolvable:$true] %s200
          %206 = dma.hbm_to_vmem [thread:$0]  %s199, 2048, %s201, %s190, 128, 128, 8
        $region28: #{feed_forward_packed.1} parent=19 // pred_fallthru
          _
      $region20: #{feed_forward_packed.1} parent=5 // pred_fallthru
        _
      %p207 = scmp.le.s32.totalorder 1, %s14
      %p208 = scmp.lt.s32.totalorder %s14, 3
      %p209 = pnand %p207, %p208
      %p210 = pneg %p209
      // Predicated region
      $region29: #{feed_forward_packed.1} parent=5 // pred_check
        _
      $region30: #{feed_forward_packed.1} parent=5 // pred_check_branch
        %212 = sbr.rel (%p209) target = $region32
      $region31: #{feed_forward_packed.1} parent=5 // pred_region
        %s213 = ssub.s32 %s14, 1
        // Predicated region
        $region33: #{feed_forward_packed.1} parent=31 // pred_check
          %p214 = pneg %p52
        $region34: #{feed_forward_packed.1} parent=31 // pred_check_branch
          %216 = sbr.rel (%p214) target = $region36
        $region35: #{feed_forward_packed.1} parent=31 // pred_region
          %217 = dma.done [#allocation4], 256
        $region36: #{feed_forward_packed.1} parent=31 // pred_fallthru
          _
        %s218 = sand.u32 %s19, 1
        %s219 = scalar_lea.sflag [#allocation7], %s218
        %s220 = sand.u32 %s65, 1
        %s221 = smul.addr %s220, 256
        %s222 = scalar_lea.vmem [#allocation6], %s221
        // Predicated region
        $region37: #{feed_forward_packed.1} parent=31 // pred_check
          %p223 = pneg %p78
        $region38: #{feed_forward_packed.1} parent=31 // pred_check_branch
          %225 = sbr.rel (%p223) target = $region40
        $region39: #{feed_forward_packed.1} parent=31 // pred_region
          %226 = dma.done %s219, 4096
        $region40: #{feed_forward_packed.1} parent=31 // pred_fallthru
          _
        %s227 = sand.u32 %s19, 1
        %s228 = scalar_lea.sflag [#allocation7], %s227
        %s229 = sand.u32 %s91, 1
        %s230 = smul.addr %s229, 128
        %s231 = scalar_lea.vmem [#allocation8], %s230
        // Predicated region
        $region41: #{feed_forward_packed.1} parent=31 // pred_check
          %p232 = pneg %p104
        $region42: #{feed_forward_packed.1} parent=31 // pred_check_branch
          %234 = sbr.rel (%p232) target = $region44
        $region43: #{feed_forward_packed.1} parent=31 // pred_region
          %235 = dma.done %s228, 2048
        $region44: #{feed_forward_packed.1} parent=31 // pred_fallthru
          _
        %p236 = pneg %p52
        %p237 = pneg %p49
        %s238 = sand.u32 %s19, 1
        %s239 = scalar_lea.sflag [#allocation7], %s238
        %s240 = sand.u32 %s65, 1
        %s241 = smul.addr %s240, 256
        %s242 = scalar_lea.vmem [#allocation6], %s241
        %p243 = pneg %p78
        %p244 = pneg %p75
        %s245 = sand.u32 %s19, 1
        %s246 = scalar_lea.sflag [#allocation7], %s245
        %s247 = sand.u32 %s91, 1
        %s248 = smul.addr %s247, 128
        %s249 = scalar_lea.vmem [#allocation8], %s248
        %p250 = pneg %p104
        %p251 = pneg %p101
        %p252 = pneg %p130
        %p253 = pneg %p127
        %s254 = smul.u32 2, %s23
        %s255 = smul.u32 16, %s24
        %s256 = smul.u32 2, %s23
        %v257 = vld [vmem:[#allocation3] sm:$0xff]
        %v258 = vld [vmem:[#allocation3 + $0x8] sm:$0xff]
        %v259 = vld [vmem:[%s222] sm:$0xff]
        %v260 = vld [vmem:[%s222 + $0x8] sm:$0xff]
        %v261 = vld [vmem:[%s222 + $0x10] sm:$0xff]
        %v262 = vld [vmem:[%s222 + $0x18] sm:$0xff]
        %v263 = vld [vmem:[%s222 + $0x20] sm:$0xff]
        %v264 = vld [vmem:[%s222 + $0x28] sm:$0xff]
        %v265 = vld [vmem:[%s222 + $0x30] sm:$0xff]
        %v266 = vld [vmem:[%s222 + $0x38] sm:$0xff]
        %v267 = vld [vmem:[%s222 + $0x40] sm:$0xff]
        %v268 = vld [vmem:[%s222 + $0x48] sm:$0xff]
        %v269 = vld [vmem:[%s222 + $0x50] sm:$0xff]
        %v270 = vld [vmem:[%s222 + $0x58] sm:$0xff]
        %v271 = vld [vmem:[%s222 + $0x60] sm:$0xff]
        %v272 = vld [vmem:[%s222 + $0x68] sm:$0xff]
        %v273 = vld [vmem:[%s222 + $0x70] sm:$0xff]
        %v274 = vld [vmem:[%s222 + $0x78] sm:$0xff]
        %v275 = vld [vmem:[%s222 + $0x80] sm:$0xff]
        %v276 = vld [vmem:[%s222 + $0x88] sm:$0xff]
        %v277 = vld [vmem:[%s222 + $0x90] sm:$0xff]
        %v278 = vld [vmem:[%s222 + $0x98] sm:$0xff]
        %v279 = vld [vmem:[%s222 + $0xa0] sm:$0xff]
        %v280 = vld [vmem:[%s222 + $0xa8] sm:$0xff]
        %v281 = vld [vmem:[%s222 + $0xb0] sm:$0xff]
        %v282 = vld [vmem:[%s222 + $0xb8] sm:$0xff]
        %v283 = vld [vmem:[%s222 + $0xc0] sm:$0xff]
        %v284 = vld [vmem:[%s222 + $0xc8] sm:$0xff]
        %v285 = vld [vmem:[%s222 + $0xd0] sm:$0xff]
        %v286 = vld [vmem:[%s222 + $0xd8] sm:$0xff]
        %v287 = vld [vmem:[%s222 + $0xe0] sm:$0xff]
        %v288 = vld [vmem:[%s222 + $0xe8] sm:$0xff]
        %v289 = vld [vmem:[%s222 + $0xf0] sm:$0xff]
        %v290 = vld [vmem:[%s222 + $0xf8] sm:$0xff]
        %291 = vmatprep.subr.mxu0 %v260
        %292 = vmatpush1.msra.mxu0 %v259
        %293 = vmatprep.subr.mxu0 %v262
        %294 = vmatpush1.msra.mxu0 %v261
        %295 = vmatprep.subr.mxu0 %v264
        %296 = vmatpush1.msra.mxu0 %v263
        %297 = vmatprep.subr.mxu0 %v266
        %298 = vmatpush1.msra.mxu0 %v265
        %299 = vmatprep.subr.mxu0 %v268
        %300 = vmatpush1.msra.mxu0 %v267
        %301 = vmatprep.subr.mxu0 %v270
        %302 = vmatpush1.msra.mxu0 %v269
        %303 = vmatprep.subr.mxu0 %v272
        %304 = vmatpush1.msra.mxu0 %v271
        %305 = vmatprep.subr.mxu0 %v274
        %306 = vmatpush1.msra.mxu0 %v273
        %307 = vmatprep.subr.mxu0 %v276
        %308 = vmatpush1.msra.mxu0 %v275
        %309 = vmatprep.subr.mxu0 %v278
        %310 = vmatpush1.msra.mxu0 %v277
        %311 = vmatprep.subr.mxu0 %v280
        %312 = vmatpush1.msra.mxu0 %v279
        %313 = vmatprep.subr.mxu0 %v282
        %314 = vmatpush1.msra.mxu0 %v281
        %315 = vmatprep.subr.mxu0 %v284
        %316 = vmatpush1.msra.mxu0 %v283
        %317 = vmatprep.subr.mxu0 %v286
        %318 = vmatpush1.msra.mxu0 %v285
        %319 = vmatprep.subr.mxu0 %v288
        %320 = vmatpush1.msra.mxu0 %v287
        %321 = vmatprep.subr.mxu0 %v290
        %322 = vmatpush1.msra.mxu0 %v289
        %323 = vmatprep.subr.mxu0 0.0
        %324 = vmatpush1.msra.mxu0 0.0
        %325 = vmatprep.subr.mxu0 0.0
        %326 = vmatpush1.msra.mxu0 0.0
        %327 = vmatprep.subr.mxu0 0.0
        %328 = vmatpush1.msra.mxu0 0.0
        %329 = vmatprep.subr.mxu0 0.0
        %330 = vmatpush1.msra.mxu0 0.0
        %331 = vmatprep.subr.mxu0 0.0
        %332 = vmatpush1.msra.mxu0 0.0
        %333 = vmatprep.subr.mxu0 0.0
        %334 = vmatpush1.msra.mxu0 0.0
        %335 = vmatprep.subr.mxu0 0.0
        %336 = vmatpush1.msra.mxu0 0.0
        %337 = vmatprep.subr.mxu0 0.0
        %338 = vmatpush1.msra.mxu0 0.0
        %339 = vmatprep.subr.mxu0 0.0
        %340 = vmatpush1.msra.mxu0 0.0
        %341 = vmatprep.subr.mxu0 0.0
        %342 = vmatpush1.msra.mxu0 0.0
        %343 = vmatprep.subr.mxu0 0.0
        %344 = vmatpush1.msra.mxu0 0.0
        %345 = vmatprep.subr.mxu0 0.0
        %346 = vmatpush1.msra.mxu0 0.0
        %347 = vmatprep.subr.mxu0 0.0
        %348 = vmatpush1.msra.mxu0 0.0
        %349 = vmatprep.subr.mxu0 0.0
        %350 = vmatpush1.msra.mxu0 0.0
        %351 = vmatprep.subr.mxu0 0.0
        %352 = vmatpush1.msra.mxu0 0.0
        %353 = vmatprep.subr.mxu0 0.0
        %354 = vmatpush1.msra.mxu0 0.0
        %355 = vmatprep.mubr.f32.mxu0 0.0
        %356 = vmatmul.mubr.f32.gmra.mrb[0].mxu0 %v257
        %v357 = vpop.f32.mrb[0].mxu0
        %v358 = vadd.f32 0.0, %v357
        %v359 = vpop.f32.mrb[0].mxu0
        %v360 = vadd.f32 0.0, %v359
        %361 = vmatprep.mubr.f32.mxu0 0.0
        %362 = vmatmul.mubr.f32.gmra.mrb[0].mxu0 %v258
        %v363 = vpop.f32.mrb[0].mxu0
        %v364 = vadd.f32 0.0, %v363
        %v365 = vpop.f32.mrb[0].mxu0
        %v366 = vadd.f32 0.0, %v365
        %367 = vdwg.mxu0
        %v368 = vxor.u32 %v358, 2147483648
        %v369 = vxor.u32 %v364, 2147483648
        %v370 = vmul.f32 %v368, 1.442695
        %v371 = vpow.pop %v370
        %v372 = vmul.f32 %v369, 1.442695
        %v373 = vpow.pop %v372
        %v374 = vadd.f32 %v371, 1.0
        %v375 = vadd.f32 %v373, 1.0
        %v376 = vrcp.pop %v374
        %v377 = vmul.f32 1.0, %v376
        %v378 = vrcp.pop %v375
        %v379 = vmul.f32 1.0, %v378
        %v380 = vmul.f32 %v358, %v377
        %v381 = vmul.f32 %v364, %v379
        %v382 = vmul.f32 %v380, %v360
        %v383 = vmul.f32 %v381, %v366
        %v384 = vld [vmem:[%s231] sm:$0xff]
        %v385 = vld [vmem:[%s231 + $0x8] sm:$0xff]
        %v386 = vld [vmem:[%s231 + $0x10] sm:$0xff]
        %v387 = vld [vmem:[%s231 + $0x18] sm:$0xff]
        %v388 = vld [vmem:[%s231 + $0x20] sm:$0xff]
        %v389 = vld [vmem:[%s231 + $0x28] sm:$0xff]
        %v390 = vld [vmem:[%s231 + $0x30] sm:$0xff]
        %v391 = vld [vmem:[%s231 + $0x38] sm:$0xff]
        %v392 = vld [vmem:[%s231 + $0x40] sm:$0xff]
        %v393 = vld [vmem:[%s231 + $0x48] sm:$0xff]
        %v394 = vld [vmem:[%s231 + $0x50] sm:$0xff]
        %v395 = vld [vmem:[%s231 + $0x58] sm:$0xff]
        %v396 = vld [vmem:[%s231 + $0x60] sm:$0xff]
        %v397 = vld [vmem:[%s231 + $0x68] sm:$0xff]
        %v398 = vld [vmem:[%s231 + $0x70] sm:$0xff]
        %v399 = vld [vmem:[%s231 + $0x78] sm:$0xff]
        %400 = vmatprep.subr.mxu0 0.0
        %401 = vmatpush1.msra.mxu0 %v384
        %402 = vmatprep.subr.mxu0 0.0
        %403 = vmatpush1.msra.mxu0 %v385
        %404 = vmatprep.subr.mxu0 0.0
        %405 = vmatpush1.msra.mxu0 %v386
        %406 = vmatprep.subr.mxu0 0.0
        %407 = vmatpush1.msra.mxu0 %v387
        %408 = vmatprep.subr.mxu0 0.0
        %409 = vmatpush1.msra.mxu0 %v388
        %410 = vmatprep.subr.mxu0 0.0
        %411 = vmatpush1.msra.mxu0 %v389
        %412 = vmatprep.subr.mxu0 0.0
        %413 = vmatpush1.msra.mxu0 %v390
        %414 = vmatprep.subr.mxu0 0.0
        %415 = vmatpush1.msra.mxu0 %v391
        %416 = vmatprep.subr.mxu0 0.0
        %417 = vmatpush1.msra.mxu0 %v392
        %418 = vmatprep.subr.mxu0 0.0
        %419 = vmatpush1.msra.mxu0 %v393
        %420 = vmatprep.subr.mxu0 0.0
        %421 = vmatpush1.msra.mxu0 %v394
        %422 = vmatprep.subr.mxu0 0.0
        %423 = vmatpush1.msra.mxu0 %v395
        %424 = vmatprep.subr.mxu0 0.0
        %425 = vmatpush1.msra.mxu0 %v396
        %426 = vmatprep.subr.mxu0 0.0
        %427 = vmatpush1.msra.mxu0 %v397
        %428 = vmatprep.subr.mxu0 0.0
        %429 = vmatpush1.msra.mxu0 %v398
        %430 = vmatprep.subr.mxu0 0.0
        %431 = vmatpush1.msra.mxu0 %v399
        %432 = vmatprep.subr.mxu0 0.0
        %433 = vmatpush1.msra.mxu0 0.0
        %434 = vmatprep.subr.mxu0 0.0
        %435 = vmatpush1.msra.mxu0 0.0
        %436 = vmatprep.subr.mxu0 0.0
        %437 = vmatpush1.msra.mxu0 0.0
        %438 = vmatprep.subr.mxu0 0.0
        %439 = vmatpush1.msra.mxu0 0.0
        %440 = vmatprep.subr.mxu0 0.0
        %441 = vmatpush1.msra.mxu0 0.0
        %442 = vmatprep.subr.mxu0 0.0
        %443 = vmatpush1.msra.mxu0 0.0
        %444 = vmatprep.subr.mxu0 0.0
        %445 = vmatpush1.msra.mxu0 0.0
        %446 = vmatprep.subr.mxu0 0.0
        %447 = vmatpush1.msra.mxu0 0.0
        %448 = vmatprep.subr.mxu0 0.0
        %449 = vmatpush1.msra.mxu0 0.0
        %450 = vmatprep.subr.mxu0 0.0
        %451 = vmatpush1.msra.mxu0 0.0
        %452 = vmatprep.subr.mxu0 0.0
        %453 = vmatpush1.msra.mxu0 0.0
        %454 = vmatprep.subr.mxu0 0.0
        %455 = vmatpush1.msra.mxu0 0.0
        %456 = vmatprep.subr.mxu0 0.0
        %457 = vmatpush1.msra.mxu0 0.0
        %458 = vmatprep.subr.mxu0 0.0
        %459 = vmatpush1.msra.mxu0 0.0
        %460 = vmatprep.subr.mxu0 0.0
        %461 = vmatpush1.msra.mxu0 0.0
        %462 = vmatprep.subr.mxu0 0.0
        %463 = vmatpush1.msra.mxu0 0.0
        %464 = vmatprep.mubr.f32.mxu0 0.0
        %465 = vmatmul.mubr.f32.gmra.mrb[0].mxu0 %v382
        %v466 = vpop.f32.mrb[0].mxu0
        %v467 = vadd.f32 0.0, %v466
        %v468 = vpop.f32.mrb[0].mxu0
        %469 = vmatprep.mubr.f32.mxu0 0.0
        %470 = vmatmul.mubr.f32.gmra.mrb[0].mxu0 %v383
        %v471 = vpop.f32.mrb[0].mxu0
        %v472 = vadd.f32 0.0, %v471
        %v473 = vpop.f32.mrb[0].mxu0
        %474 = vdwg.mxu0
        %p475 = scmp.eq.s32.totalorder %s24, 0
        // Predicated region
        $region45: #{feed_forward_packed.1} parent=31 // pred_check
          %p476 = pneg %p475
        $region46: #{feed_forward_packed.1} parent=31 // pred_check_branch
          %478 = sbr.rel (%p476) target = $region48
        $region47: #{feed_forward_packed.1} parent=31 // pred_region
          %479 = vst [vmem:[#allocation2] sm:$0xff] %v467
          %480 = vst [vmem:[#allocation2 + $0x8] sm:$0xff] %v472
        $region48: #{feed_forward_packed.1} parent=31 // pred_fallthru
          _
        %p481 = scmp.ne.s32.totalorder %s24, 0
        // Predicated region
        $region49: #{feed_forward_packed.1} parent=31 // pred_check
          %p482 = pneg %p481
        $region50: #{feed_forward_packed.1} parent=31 // pred_check_branch
          %484 = sbr.rel (%p482) target = $region52
        $region51: #{feed_forward_packed.1} parent=31 // pred_region
          %v485 = vld [vmem:[#allocation2] sm:$0xff]
          %v486 = vld [vmem:[#allocation2 + $0x8] sm:$0xff]
          %v487 = vadd.f32 %v485, %v467
          %v488 = vadd.f32 %v486, %v472
          %489 = vst [vmem:[#allocation2] sm:$0xff] %v487
          %490 = vst [vmem:[#allocation2 + $0x8] sm:$0xff] %v488
        $region52: #{feed_forward_packed.1} parent=31 // pred_fallthru
          _
        %p491 = scmp.eq.s32.totalorder %s24, 1
        // Predicated region
        $region53: #{feed_forward_packed.1} parent=31 // pred_check
          %p492 = pneg %p491
        $region54: #{feed_forward_packed.1} parent=31 // pred_check_branch
          %494 = sbr.rel (%p492) target = $region56
        $region55: #{feed_forward_packed.1} parent=31 // pred_region
          %v495 = vld [vmem:[#allocation2] sm:$0xff]
          %v496 = vld [vmem:[#allocation2 + $0x8] sm:$0xff]
          %497 = vst [vmem:[#allocation9] sm:$0xff] %v495
          %498 = vst [vmem:[#allocation9 + $0x8] sm:$0xff] %v496
        $region56: #{feed_forward_packed.1} parent=31 // pred_fallthru
          _
        // Predicated region
        $region57: #{feed_forward_packed.1} parent=31 // pred_check
          %p499 = pneg %p127
        $region58: #{feed_forward_packed.1} parent=31 // pred_check_branch
          %501 = sbr.rel (%p499) target = $region60
        $region59: #{feed_forward_packed.1} parent=31 // pred_region
          %s502 = smul.u32 2, %s23
          %s504 = ssub.s32 256, 256
          %505 = vsyncadd [#allocation5], %s504
          %s506 = smul.addr %s502, 128
          %s507 = scalar_lea.hbm %s3, %s506
          %s508 = sshll.u32 [#allocation9], 4
          %s509 = int_to_ptr.vmem [resolvable:$true] %s508
          %514 = dma.vmem_to_hbm [thread:$0]  %s509, 256, %s507, [#allocation5], 128, 128, 8
        $region60: #{feed_forward_packed.1} parent=31 // pred_fallthru
          _
        // Predicated region
        $region61: #{feed_forward_packed.1} parent=31 // pred_check
          %p515 = pneg %p127
        $region62: #{feed_forward_packed.1} parent=31 // pred_check_branch
          %517 = sbr.rel (%p515) target = $region64
        $region63: #{feed_forward_packed.1} parent=31 // pred_region
          %518 = dma.done [#allocation5], 256
        $region64: #{feed_forward_packed.1} parent=31 // pred_fallthru
          _
      $region32: #{feed_forward_packed.1} parent=5 // pred_fallthru
        _
      %p519 = scmp.le.s32.totalorder 2, %s14
      // Predicated region
      $region65: #{feed_forward_packed.1} parent=5 // pred_check
        %p520 = pneg %p519
      $region66: #{feed_forward_packed.1} parent=5 // pred_check_branch
        %522 = sbr.rel (%p520) target = $region68
      $region67: #{feed_forward_packed.1} parent=5 // pred_region
        %s523 = ssub.s32 %s14, 2
      $region68: #{feed_forward_packed.1} parent=5 // pred_fallthru
        _
    $region6: #{feed_forward_packed.1} parent=1 // loop_footer
      %s18 = sadd.s32 1, %s14
    $region7: #{feed_forward_packed.1} parent=1 // loop_footer_branch
      %13 = sbr.rel target = $region3
    $region8: #{feed_forward_packed.1} parent=1 // loop_exit
      _
    %524 = vsyncpa [#allocation4], 1
    %s525 = scalar_lea.sflag [#allocation4], 1
    %526 = vsyncpa %s525, 1
    %527 = vsyncpa [#allocation7], 1
    %s528 = scalar_lea.sflag [#allocation7], 1
    %529 = vsyncpa %s528, 1
    %530 = vsyncpa [#allocation5], 1
    %s531 = scalar_lea.sflag [#allocation5], 1
    %532 = vsyncpa %s531, 1

</llo_original>
